<compile_context>
chip_gen: v7x
topology: tpu7x:2x2x1
jax: 0.10.0
libtpu: 0.0.40
codegen_flags: <defaults>
</compile_context>

<pallas_src>
import jax
import jax.numpy as jnp
from jax.experimental import pallas as pl
from jax.experimental.pallas import tpu as pltpu


def _constant_input_kernel(const_ref, o_ref):
    # const_ref: (1, F)   the flattened learned constant
    # o_ref    : (TB, F)  TB batch rows of the output
    o_ref[...] = jnp.broadcast_to(const_ref[...], o_ref.shape).astype(o_ref.dtype)


def constant_input_forward(const_param, batch):
    """Equivalent of ConstantInput.forward: broadcast (1,C,H,W) -> (B,C,H,W)."""
    _, c, h, w = const_param.shape
    f = c * h * w
    flat = const_param.reshape(1, f)

    # Batch-tile: a single full-batch block for small B (block == full dim is
    # always legal); cap at 256 rows (multiple of 8 sublanes) for huge batches
    # so VMEM stays bounded on v7x's 64 MiB and the grid keeps >=2 parallel
    # steps to feed both TensorCores.
    tb = batch if batch <= 512 else 256
    grid = (pl.cdiv(batch, tb),)

    out = pl.pallas_call(
        _constant_input_kernel,
        out_shape=jax.ShapeDtypeStruct((batch, f), const_param.dtype),
        grid_spec=pltpu.PrefetchScalarGridSpec(
            num_scalar_prefetch=0,
            grid=grid,
            in_specs=[pl.BlockSpec((1, f), lambda i: (0, 0))],
            out_specs=pl.BlockSpec((tb, f), lambda i: (i, 0)),
        ),
        compiler_params=pltpu.CompilerParams(
            dimension_semantics=("parallel",)),
    )(flat)

    return out.reshape(batch, c, h, w)


class ConstantInput:
    """Functional mirror of the PyTorch module: holds the constant parameter."""

    def __init__(self, key, channel, size=4, dtype=jnp.float32):
        self.input = jax.random.normal(key, (1, channel, size, size), dtype=dtype)

    def __call__(self, x):
        batch = x.shape[0]
        return constant_input_forward(self.input, batch)


def reference_constant_input(const_param, batch):
    """Pure-JAX reference of `param.repeat(batch, 1, 1, 1)`."""
    _, c, h, w = const_param.shape
    return jnp.broadcast_to(const_param, (batch, c, h, w))


if __name__ == "__main__":
    key = jax.random.PRNGKey(0)
    k_param, k_latent = jax.random.split(key)

    batch, channel, size, style_dim = 2, 32, 4, 32
    module = ConstantInput(k_param, channel, size)
    # The forward only uses input.shape[0]; make a latent-like input anyway.
    latent = jax.random.normal(k_latent, (batch, style_dim), dtype=jnp.float32)

    out = module(latent)
    out = jax.block_until_ready(out)

    ref = reference_constant_input(module.input, batch)
    assert out.shape == (batch, channel, size, size), out.shape
    assert jnp.array_equal(out, ref), float(jnp.max(jnp.abs(out - ref)))
    print("KERNEL_OK")
</pallas_src>

<mosaic_0001>
module attributes {stable_mosaic.version = 11 : i64} {
  func.func @_constant_input_kernel(%arg0: i32, %arg1: memref<1x512xf32, #tpu.memory_space<vmem>>, %arg2: memref<2x512xf32, #tpu.memory_space<vmem>>) attributes {dimension_semantics = [#tpu.dimension_semantics<parallel>], iteration_bounds = array<i64: 1>, scalar_prefetch = 0 : i64, scratch_operands = 0 : i64, tpu.core_type = #tpu.core_type<tc>, window_params = [{pipeline_mode = #tpu.pipeline_mode<synchronous>, transform_indices = @transform_0, window_bounds = array<i64: 1, 512>}, {transform_indices = @transform_1, window_bounds = array<i64: 2, 512>}]} {
    %c0 = arith.constant 0 : index
    %c0_0 = arith.constant 0 : index
    %0 = vector.load %arg1[%c0, %c0_0] : memref<1x512xf32, #tpu.memory_space<vmem>>, vector<1x512xf32>
    %1 = vector.shape_cast %0 : vector<1x512xf32> to vector<1x512xf32>
    %2 = vector.broadcast %1 : vector<1x512xf32> to vector<2x512xf32>
    %c0_1 = arith.constant 0 : index
    %c0_2 = arith.constant 0 : index
    %3 = vector.load %arg2[%c0_1, %c0_2] : memref<2x512xf32, #tpu.memory_space<vmem>>, vector<2x512xf32>
    tpu.vector_store %arg2[%c0_1, %c0_2], %2 {strides = array<i32>} : memref<2x512xf32, #tpu.memory_space<vmem>>, vector<2x512xf32>,
    return
  }
  func.func @transform_0(%arg0: i32) -> (i32, i32) {
    %c0_i32 = arith.constant 0 : i32
    %c0_i32_0 = arith.constant 0 : i32
    %c0_i32_1 = arith.constant 0 : i32
    return %c0_i32, %c0_i32_0 : i32, i32
  }
  func.func @transform_1(%arg0: i32) -> (i32, i32) {
    %c0_i32 = arith.constant 0 : i32
    %c0_i32_0 = arith.constant 0 : i32
    return %arg0, %c0_i32 : i32, i32
  }
}

</mosaic_0001>

<llo_original>
// kernel: tpu_custom_call.1
$region0: #{tpu_custom_call.1}
  #allocation0 [shape = 'u32[]', space=smem, size = 0x4, offset = 0x4, fixed_abs, tag = 'smem constant byte address 0x4 - core index']
  #allocation1 [shape = 'u32[144,128]{1,0:T(1,128)}', space=vmem, size = 0x12000, scoped, tag = 'internal scratch']
  %s0 = inlined_call_operand.hbm [shape: f32[1,512], index: 0, kind: input, shape index: {}]
  %s1 = inlined_call_operand.hbm [shape: f32[2,512], index: 1, kind: output, shape index: {}]
  %s2 = sld [smem:[#allocation0]]
  $region18: #{tpu_custom_call.1} parent=0
    _
  %s4 = ssub.s32 1, %s2
  %s5 = scalar_select 0, %s4, %s2
  $region1: #{tpu_custom_call.1} parent=0
    #allocation2 [shape = 'u8[2048]{0}', space=vmem, size = 0x800, scoped, tag = 'input window, operand 0, single buffered']
    #allocation3 [shape = 's32[1]{0}', space=sflag, size = 0x4, scoped, tag = 'scoped memory for tpu_custom_call.1']
    #allocation4 [shape = 's32[1]{0}', space=sflag, size = 0x4, scoped, tag = 'scoped memory for tpu_custom_call.1']
    #allocation5 [shape = 'u8[4096]{0}', space=vmem, size = 0x1000, scoped, tag = 'output window, operand 0, single buffered']
    %6 = vsyncpa [#allocation3], 0
    %7 = vsyncpa [#allocation4], 0
    // Predicated region
    $region2: #{tpu_custom_call.1} parent=1 // pred_check
      _
    $region3: #{tpu_custom_call.1} parent=1 // pred_check_branch
      %9 = sbr.rel (0) target = $region5
    $region4: #{tpu_custom_call.1} parent=1 // pred_region
      %s11 = ssub.s32 64, 64
      %12 = vsyncadd [#allocation3], %s11
      %s14 = sshll.u32 [#allocation2], 4
      %s15 = int_to_ptr.vmem [resolvable:$true] %s14
      %17 = dma.hbm_to_vmem [thread:$0]  %s0, 64, %s15, [#allocation3]
    $region5: #{tpu_custom_call.1} parent=1 // pred_fallthru
      _
    // Predicated region
    $region6: #{tpu_custom_call.1} parent=1 // pred_check
      _
    $region7: #{tpu_custom_call.1} parent=1 // pred_check_branch
      %19 = sbr.rel (0) target = $region9
    $region8: #{tpu_custom_call.1} parent=1 // pred_region
      %20 = dma.done [#allocation3], 64
    $region9: #{tpu_custom_call.1} parent=1 // pred_fallthru
      _
    %v21 = vld [vmem:[#allocation2] sm:$0xf]
    %v23 = vlaneseq
    %v24 = vshrl.u32 %v23, 7
    %v25 = vsub.s32 0, %v24
    %v26 = vrot.slane %v21, %v25
    %v27 = vlaneseq
    %v28 = vshrl.u32 %v27, 7
    %v29 = vsub.s32 1, %v28
    %v30 = vrot.slane %v21, %v29
    %v31 = vlaneseq
    %v32 = vshrl.u32 %v31, 7
    %v33 = vsub.s32 2, %v32
    %v34 = vrot.slane %v21, %v33
    %v35 = vlaneseq
    %v36 = vshrl.u32 %v35, 7
    %v37 = vsub.s32 3, %v36
    %v38 = vrot.slane %v21, %v37
    %v39 = vcombine.low %v26, %v30
    %v40 = vcombine.low %v34, %v38
    %v42 = vunpack.c.l.s4 1983009808
    %v43 = vunpack.c.0.s8 %v42
    %v44 = vlaneseq
    %v45 = vshrl.u32 %v44, 7
    %v46 = vsub.s32 %v43, %v45
    %v47 = vrot.slane %v39, %v46
    %v49 = vunpack.c.l.s4 1983009808
    %v50 = vunpack.c.0.s8 %v49
    %v51 = vlaneseq
    %v52 = vshrl.u32 %v51, 7
    %v53 = vsub.s32 %v50, %v52
    %v54 = vrot.slane %v40, %v53
    %v55 = vcombine.low %v47, %v54
    %57 = vst [vmem:[#allocation5] sm:$0xff] %v55
    // Predicated region
    $region10: #{tpu_custom_call.1} parent=1 // pred_check
      _
    $region11: #{tpu_custom_call.1} parent=1 // pred_check_branch
      %59 = sbr.rel (0) target = $region13
    $region12: #{tpu_custom_call.1} parent=1 // pred_region
      %s61 = ssub.s32 128, 128
      %62 = vsyncadd [#allocation4], %s61
      %s64 = sshll.u32 [#allocation5], 4
      %s65 = int_to_ptr.vmem [resolvable:$true] %s64
      %67 = dma.vmem_to_hbm [thread:$0]  %s65, 128, %s1, [#allocation4]
    $region13: #{tpu_custom_call.1} parent=1 // pred_fallthru
      _
    // Predicated region
    $region14: #{tpu_custom_call.1} parent=1 // pred_check
      _
    $region15: #{tpu_custom_call.1} parent=1 // pred_check_branch
      %69 = sbr.rel (0) target = $region17
    $region16: #{tpu_custom_call.1} parent=1 // pred_region
      %70 = dma.done [#allocation4], 128
    $region17: #{tpu_custom_call.1} parent=1 // pred_fallthru
      _
    %71 = vsyncpa [#allocation3], 1
    %72 = vsyncpa [#allocation4], 1

</llo_original>
